<compile_context>
chip_gen: v7x
topology: tpu7x:2x2x1
jax: 0.10.0
libtpu: 0.0.40
codegen_flags: <defaults>
</compile_context>

<pallas_src>
import jax
import jax.numpy as jnp
from jax.experimental import pallas as pl
from jax.experimental.pallas import tpu as pltpu

NOBJ_AVG = 49.0       # module default average_nobj
LEAKY_SLOPE = 0.01    # torch.nn.LeakyReLU default negative_slope


def _eq2to0_kernel(x_ref, w_ref, bias_ref, o_ref):
    # x_ref: (TN, D*m*m) in x's native dtype, w_ref: (D*m*m, S) matching dtype,
    # bias_ref: (1, S) f32, o_ref: (TN, S) in x's dtype.
    out = jnp.dot(x_ref[...], w_ref[...],
                  preferred_element_type=jnp.float32)        # MXU, f32 accumulation
    out = out + bias_ref[...]                                # broadcast bias (f32)
    out = jnp.where(out >= 0, out, LEAKY_SLOPE * out)        # LeakyReLU (activate_lin)
    o_ref[...] = out.astype(o_ref.dtype)


def _sublane_multiple(dtype):
    # f32 -> 8, bf16 -> 16, int8/fp8 -> 32 (sub-32-bit dtypes pack along sublanes)
    return max(8, 32 // jnp.dtype(dtype).itemsize)


def _tpu_vmem_capacity_bytes():
    try:
        return int(pltpu.get_tpu_info().vmem_capacity_bytes)
    except Exception:
        return 128 << 20   # conservative default (v5e/v6e class)


def _pick_block_rows(n, row_bytes, dtype, target_bytes, min_grid_steps=2):
    """Rows per grid step: ~target_bytes per x block, valid TPU block shape."""
    sub = _sublane_multiple(dtype)
    tn = max(1, target_bytes // max(row_bytes, 1))
    # Ensure >=2 grid steps when the batch allows it (v7x megacore sharding;
    # one extra ~0.35us step is negligible on single-TC chips).
    if min_grid_steps > 1 and n >= min_grid_steps * sub:
        tn = min(tn, pl.cdiv(n, min_grid_steps))
    if tn >= n:
        return n                       # full batch in one block (full-extent dim OK)
    if n < sub:
        return n
    return max((tn // sub) * sub, sub)


def eq2to0_forward(x, coefs00, coefs01, coefs10, coefs11, bias):
    N, D, m, _ = x.shape
    S = coefs10.shape[1]
    dmm = D * m * m

    # ---- plain-JAX glue (done once, outside the grid loop) -------------------
    # factorized coefficient tensor: (D, S, basis_dim=2)
    coefs = (coefs00[:, None, :] * coefs10[:, :, None]
             + coefs01[None, :, :] * coefs11[:, :, None]).astype(jnp.float32)

    # Basis-reduction matrix r: (m*m, 2) with columns
    #   [diag mask / NOBJ_AVG,  ones / NOBJ_AVG^2]   (eops_2_to_0, 'sum' agg)
    eye_flat = jnp.eye(m, dtype=jnp.float32).reshape(m * m)
    ones_flat = jnp.ones((m * m,), jnp.float32)
    r = jnp.stack([eye_flat / NOBJ_AVG, ones_flat / (NOBJ_AVG * NOBJ_AVG)], axis=1)

    # Fold reduction + coefficient contraction into one weight:
    #   w[d*m*m + p, s] = sum_b r[p, b] * coefs[d, s, b]
    w = jnp.einsum('pb,dsb->dps', r, coefs).reshape(dmm, S)

    # Keep x in its native dtype end-to-end; match w's dtype to it so the MXU
    # runs natively (bf16 LHS/RHS) with f32 accumulation — no in-kernel cast.
    if jnp.dtype(x.dtype) != jnp.dtype(jnp.float32):
        w = w.astype(x.dtype)
    bias_f32 = bias.astype(jnp.float32)

    # Lane-dense flattened input
    x2 = x.reshape(N, dmm)

    # ---- generation-aware block sizing & VMEM budget -------------------------
    vmem_cap = _tpu_vmem_capacity_bytes()
    if vmem_cap <= (64 << 20):                      # v7x-class: 64 MiB / TC
        target_bytes, vmem_ceiling = (8 << 20), (48 << 20)
    else:                                           # v5e / v6e: 128 MiB
        target_bytes, vmem_ceiling = (12 << 20), (100 << 20)

    row_bytes = dmm * x.dtype.itemsize
    tn = _pick_block_rows(N, row_bytes, x.dtype, target_bytes)
    grid = (pl.cdiv(N, tn),)

    out_itemsize = x.dtype.itemsize
    vmem_need = (2 * tn * row_bytes                       # x double buffer
                 + 2 * tn * S * out_itemsize              # out double buffer
                 + 2 * (dmm * S * w.dtype.itemsize + S * 4))  # w + bias
    vmem_limit = int(min(max(vmem_need + (4 << 20), 32 << 20), vmem_ceiling))

    cost = pl.CostEstimate(
        flops=2 * N * dmm * S,
        transcendentals=0,
        bytes_accessed=(N * dmm * x.dtype.itemsize
                        + N * S * out_itemsize
                        + dmm * S * w.dtype.itemsize))

    # ---- pallas_call ---------------------------------------------------------
    out = pl.pallas_call(
        _eq2to0_kernel,
        out_shape=jax.ShapeDtypeStruct((N, S), x.dtype),
        grid_spec=pl.GridSpec(
            grid=grid,
            in_specs=[
                pl.BlockSpec((tn, dmm), lambda i: (i, 0)),
                pl.BlockSpec((dmm, S), lambda i: (0, 0)),   # constant block: not re-DMA'd
                pl.BlockSpec((1, S), lambda i: (0, 0)),     # constant block: not re-DMA'd
            ],
            out_specs=pl.BlockSpec((tn, S), lambda i: (i, 0)),
        ),
        compiler_params=pltpu.CompilerParams(
            dimension_semantics=("parallel",),
            vmem_limit_bytes=vmem_limit),
        cost_estimate=cost,
    )(x2, w, bias_f32)
    return out


def eq2to0_reference(x, coefs00, coefs01, coefs10, coefs11, bias):
    # pure-JAX reference mirroring the PyTorch forward (f32 math)
    x = x.astype(jnp.float32)
    trace = jnp.trace(x, axis1=-2, axis2=-1)                 # (N, D)
    totsum = jnp.sum(x, axis=(-2, -1))                       # (N, D)
    ops = jnp.stack([trace / NOBJ_AVG, totsum / NOBJ_AVG ** 2], axis=2)  # (N, D, 2)
    coefs = (coefs00[:, None, :] * coefs10[:, :, None]
             + coefs01[None, :, :] * coefs11[:, :, None])    # (D, S, 2)
    out = jnp.einsum('dsb,ndb->ns', coefs, ops) + bias
    return jnp.where(out >= 0, out, LEAKY_SLOPE * out)


if __name__ == "__main__":
    N, D, m, S = 8, 4, 16, 8         # batch, in_dim, objects, out_dim
    basis_dim = 2                    # config='s' -> 2*len('s')

    key = jax.random.PRNGKey(0)
    k_x, k00, k01, k10, k11 = jax.random.split(key, 5)

    x = jax.random.normal(k_x, (N, D, m, m), dtype=jnp.float32)

    # deterministic parameter init, matching the module's __init__ distributions
    coefs00 = jax.random.normal(k00, (D, basis_dim), jnp.float32) * jnp.sqrt(1.0 / basis_dim)
    coefs01 = jax.random.normal(k01, (S, basis_dim), jnp.float32) * jnp.sqrt(1.0 / basis_dim)
    coefs10 = jax.random.normal(k10, (D, S), jnp.float32) * jnp.sqrt(2.0 / D)
    coefs11 = jax.random.normal(k11, (D, S), jnp.float32) * jnp.sqrt(2.0 / D)
    bias = jnp.zeros((1, S), jnp.float32)

    # f32 path
    out = eq2to0_forward(x, coefs00, coefs01, coefs10, coefs11, bias)
    out = jax.block_until_ready(out)
    ref = eq2to0_reference(x, coefs00, coefs01, coefs10, coefs11, bias)
    assert out.shape == (N, S)
    assert jnp.allclose(out, ref, atol=1e-5, rtol=1e-4), (out, ref)

    # bf16 streaming path (no in-kernel cast; bf16 MXU with f32 accumulation)
    x_bf = x.astype(jnp.bfloat16)
    out_bf = eq2to0_forward(x_bf, coefs00, coefs01, coefs10, coefs11, bias)
    out_bf = jax.block_until_ready(out_bf)
    ref_bf = eq2to0_reference(x_bf, coefs00, coefs01, coefs10, coefs11, bias)
    assert out_bf.shape == (N, S)
    assert jnp.allclose(out_bf.astype(jnp.float32), ref_bf, atol=5e-2, rtol=5e-2), (out_bf, ref_bf)

    print("KERNEL_OK")
</pallas_src>

<mosaic_0001>
module attributes {stable_mosaic.version = 11 : i64} {
  func.func @_eq2to0_kernel(%arg0: i32, %arg1: memref<8x1024xf32, #tpu.memory_space<vmem>>, %arg2: memref<1024x8xf32, #tpu.memory_space<vmem>>, %arg3: memref<1x8xf32, #tpu.memory_space<vmem>>, %arg4: memref<8x8xf32, #tpu.memory_space<vmem>>) attributes {dimension_semantics = [#tpu.dimension_semantics<parallel>], iteration_bounds = array<i64: 1>, scalar_prefetch = 0 : i64, scratch_operands = 0 : i64, tpu.core_type = #tpu.core_type<tc>, window_params = [{transform_indices = @transform_0, window_bounds = array<i64: 8, 1024>}, {pipeline_mode = #tpu.pipeline_mode<synchronous>, transform_indices = @transform_1, window_bounds = array<i64: 1024, 8>}, {pipeline_mode = #tpu.pipeline_mode<synchronous>, transform_indices = @transform_2, window_bounds = array<i64: 1, 8>}, {transform_indices = @transform_3, window_bounds = array<i64: 8, 8>}]} {
    %c0 = arith.constant 0 : index
    %c0_0 = arith.constant 0 : index
    %0 = vector.load %arg1[%c0, %c0_0] : memref<8x1024xf32, #tpu.memory_space<vmem>>, vector<8x1024xf32>
    %c0_1 = arith.constant 0 : index
    %c0_2 = arith.constant 0 : index
    %1 = vector.load %arg2[%c0_1, %c0_2] : memref<1024x8xf32, #tpu.memory_space<vmem>>, vector<1024x8xf32>
    %cst = arith.constant dense<0.000000e+00> : vector<8x8xf32>
    %2 = tpu.matmul %0, %1, %cst {dimension_numbers = #tpu.dot_dimension_numbers<[1], [0], [0], [1], [0, 0, 1, 1], [], []>} : vector<8x1024xf32>, vector<1024x8xf32>, vector<8x8xf32> -> vector<8x8xf32>
    %c0_3 = arith.constant 0 : index
    %c0_4 = arith.constant 0 : index
    %3 = vector.load %arg3[%c0_3, %c0_4] : memref<1x8xf32, #tpu.memory_space<vmem>>, vector<1x8xf32>
    %4 = vector.broadcast %3 : vector<1x8xf32> to vector<8x8xf32>
    %5 = arith.addf %2, %4 : vector<8x8xf32>
    %cst_5 = arith.constant 0.000000e+00 : f32
    %6 = vector.broadcast %cst_5 : f32 to vector<8x8xf32>
    %7 = arith.cmpf oge, %5, %6 : vector<8x8xf32>
    %cst_6 = arith.constant 0.00999999977 : f32
    %8 = vector.broadcast %cst_6 : f32 to vector<8x8xf32>
    %9 = arith.mulf %8, %5 : vector<8x8xf32>
    %10 = arith.select %7, %5, %9 : vector<8x8xi1>, vector<8x8xf32>
    %c0_7 = arith.constant 0 : index
    %c0_8 = arith.constant 0 : index
    %11 = vector.load %arg4[%c0_7, %c0_8] : memref<8x8xf32, #tpu.memory_space<vmem>>, vector<8x8xf32>
    tpu.vector_store %arg4[%c0_7, %c0_8], %10 {strides = array<i32>} : memref<8x8xf32, #tpu.memory_space<vmem>>, vector<8x8xf32>,
    return
  }
  func.func @transform_0(%arg0: i32) -> (i32, i32) {
    %c0_i32 = arith.constant 0 : i32
    %c0_i32_0 = arith.constant 0 : i32
    return %arg0, %c0_i32 : i32, i32
  }
  func.func @transform_1(%arg0: i32) -> (i32, i32) {
    %c0_i32 = arith.constant 0 : i32
    %c0_i32_0 = arith.constant 0 : i32
    %c0_i32_1 = arith.constant 0 : i32
    return %c0_i32, %c0_i32_0 : i32, i32
  }
  func.func @transform_2(%arg0: i32) -> (i32, i32) {
    %c0_i32 = arith.constant 0 : i32
    %c0_i32_0 = arith.constant 0 : i32
    %c0_i32_1 = arith.constant 0 : i32
    return %c0_i32, %c0_i32_0 : i32, i32
  }
  func.func @transform_3(%arg0: i32) -> (i32, i32) {
    %c0_i32 = arith.constant 0 : i32
    %c0_i32_0 = arith.constant 0 : i32
    return %arg0, %c0_i32 : i32, i32
  }
}

</mosaic_0001>

<llo_original>
// kernel: tpu_custom_call.1
$region0: #{tpu_custom_call.1}
  #allocation0 [shape = 'u32[]', space=smem, size = 0x4, offset = 0x4, fixed_abs, tag = 'smem constant byte address 0x4 - core index']
  #allocation1 [shape = 'u32[144,128]{1,0:T(1,128)}', space=vmem, size = 0x12000, scoped, tag = 'internal scratch']
  %s0 = inlined_call_operand.vmem [shape: f32[8,1024], index: 0, kind: input, shape index: {}]
  %s1 = inlined_call_operand.vmem [shape: f32[1024,8], index: 1, kind: input, shape index: {}]
  %s2 = inlined_call_operand.vmem [shape: f32[1,8], index: 2, kind: input, shape index: {}]
  %s3 = inlined_call_operand.hbm [shape: f32[8,8], index: 3, kind: output, shape index: {}]
  %s4 = sld [smem:[#allocation0]]
  $region22: #{tpu_custom_call.1} parent=0
    _
  %s6 = ssub.s32 1, %s4
  %s7 = scalar_select 0, %s6, %s4
  $region1: #{tpu_custom_call.1} parent=0
    #allocation2 [shape = 'u8[4096]{0}', space=vmem, size = 0x1000, scoped, tag = 'output window, operand 0, single buffered']
    #allocation3 [shape = 's32[1]{0}', space=sflag, size = 0x4, scoped, tag = 'scoped memory for tpu_custom_call.1']
    %8 = vsyncpa [#allocation3], 0
    // Predicated region
    $region2: #{tpu_custom_call.1} parent=1 // pred_check
      _
    $region3: #{tpu_custom_call.1} parent=1 // pred_check_branch
      %10 = sbr.rel (0) target = $region5
    $region4: #{tpu_custom_call.1} parent=1 // pred_region
      _
    $region5: #{tpu_custom_call.1} parent=1 // pred_fallthru
      _
    // Predicated region
    $region6: #{tpu_custom_call.1} parent=1 // pred_check
      _
    $region7: #{tpu_custom_call.1} parent=1 // pred_check_branch
      %12 = sbr.rel (0) target = $region9
    $region8: #{tpu_custom_call.1} parent=1 // pred_region
      _
    $region9: #{tpu_custom_call.1} parent=1 // pred_fallthru
      _
    // Predicated region
    $region10: #{tpu_custom_call.1} parent=1 // pred_check
      _
    $region11: #{tpu_custom_call.1} parent=1 // pred_check_branch
      %14 = sbr.rel (0) target = $region13
    $region12: #{tpu_custom_call.1} parent=1 // pred_region
      _
    $region13: #{tpu_custom_call.1} parent=1 // pred_fallthru
      _
    %v15 = vld [vmem:[%s0] sm:$0xff]
    %v16 = vld [vmem:[%s0 + $0x8] sm:$0xff]
    %v17 = vld [vmem:[%s0 + $0x10] sm:$0xff]
    %v18 = vld [vmem:[%s0 + $0x18] sm:$0xff]
    %v19 = vld [vmem:[%s0 + $0x20] sm:$0xff]
    %v20 = vld [vmem:[%s0 + $0x28] sm:$0xff]
    %v21 = vld [vmem:[%s0 + $0x30] sm:$0xff]
    %v22 = vld [vmem:[%s0 + $0x38] sm:$0xff]
    %v23 = vld [vmem:[%s1] sm:$0xff]
    %v24 = vld [vmem:[%s1 + $0x8] sm:$0xff]
    %v25 = vld [vmem:[%s1 + $0x10] sm:$0xff]
    %v26 = vld [vmem:[%s1 + $0x18] sm:$0xff]
    %v27 = vld [vmem:[%s1 + $0x20] sm:$0xff]
    %v28 = vld [vmem:[%s1 + $0x28] sm:$0xff]
    %v29 = vld [vmem:[%s1 + $0x30] sm:$0xff]
    %v30 = vld [vmem:[%s1 + $0x38] sm:$0xff]
    %v31 = vld [vmem:[%s1 + $0x40] sm:$0xff]
    %v32 = vld [vmem:[%s1 + $0x48] sm:$0xff]
    %v33 = vld [vmem:[%s1 + $0x50] sm:$0xff]
    %v34 = vld [vmem:[%s1 + $0x58] sm:$0xff]
    %v35 = vld [vmem:[%s1 + $0x60] sm:$0xff]
    %v36 = vld [vmem:[%s1 + $0x68] sm:$0xff]
    %v37 = vld [vmem:[%s1 + $0x70] sm:$0xff]
    %v38 = vld [vmem:[%s1 + $0x78] sm:$0xff]
    %v39 = vld [vmem:[%s1 + $0x80] sm:$0xff]
    %v40 = vld [vmem:[%s1 + $0x88] sm:$0xff]
    %v41 = vld [vmem:[%s1 + $0x90] sm:$0xff]
    %v42 = vld [vmem:[%s1 + $0x98] sm:$0xff]
    %v43 = vld [vmem:[%s1 + $0xa0] sm:$0xff]
    %v44 = vld [vmem:[%s1 + $0xa8] sm:$0xff]
    %v45 = vld [vmem:[%s1 + $0xb0] sm:$0xff]
    %v46 = vld [vmem:[%s1 + $0xb8] sm:$0xff]
    %v47 = vld [vmem:[%s1 + $0xc0] sm:$0xff]
    %v48 = vld [vmem:[%s1 + $0xc8] sm:$0xff]
    %v49 = vld [vmem:[%s1 + $0xd0] sm:$0xff]
    %v50 = vld [vmem:[%s1 + $0xd8] sm:$0xff]
    %v51 = vld [vmem:[%s1 + $0xe0] sm:$0xff]
    %v52 = vld [vmem:[%s1 + $0xe8] sm:$0xff]
    %v53 = vld [vmem:[%s1 + $0xf0] sm:$0xff]
    %v54 = vld [vmem:[%s1 + $0xf8] sm:$0xff]
    %v55 = vld [vmem:[%s1 + $0x100] sm:$0xff]
    %v56 = vld [vmem:[%s1 + $0x108] sm:$0xff]
    %v57 = vld [vmem:[%s1 + $0x110] sm:$0xff]
    %v58 = vld [vmem:[%s1 + $0x118] sm:$0xff]
    %v59 = vld [vmem:[%s1 + $0x120] sm:$0xff]
    %v60 = vld [vmem:[%s1 + $0x128] sm:$0xff]
    %v61 = vld [vmem:[%s1 + $0x130] sm:$0xff]
    %v62 = vld [vmem:[%s1 + $0x138] sm:$0xff]
    %v63 = vld [vmem:[%s1 + $0x140] sm:$0xff]
    %v64 = vld [vmem:[%s1 + $0x148] sm:$0xff]
    %v65 = vld [vmem:[%s1 + $0x150] sm:$0xff]
    %v66 = vld [vmem:[%s1 + $0x158] sm:$0xff]
    %v67 = vld [vmem:[%s1 + $0x160] sm:$0xff]
    %v68 = vld [vmem:[%s1 + $0x168] sm:$0xff]
    %v69 = vld [vmem:[%s1 + $0x170] sm:$0xff]
    %v70 = vld [vmem:[%s1 + $0x178] sm:$0xff]
    %v71 = vld [vmem:[%s1 + $0x180] sm:$0xff]
    %v72 = vld [vmem:[%s1 + $0x188] sm:$0xff]
    %v73 = vld [vmem:[%s1 + $0x190] sm:$0xff]
    %v74 = vld [vmem:[%s1 + $0x198] sm:$0xff]
    %v75 = vld [vmem:[%s1 + $0x1a0] sm:$0xff]
    %v76 = vld [vmem:[%s1 + $0x1a8] sm:$0xff]
    %v77 = vld [vmem:[%s1 + $0x1b0] sm:$0xff]
    %v78 = vld [vmem:[%s1 + $0x1b8] sm:$0xff]
    %v79 = vld [vmem:[%s1 + $0x1c0] sm:$0xff]
    %v80 = vld [vmem:[%s1 + $0x1c8] sm:$0xff]
    %v81 = vld [vmem:[%s1 + $0x1d0] sm:$0xff]
    %v82 = vld [vmem:[%s1 + $0x1d8] sm:$0xff]
    %v83 = vld [vmem:[%s1 + $0x1e0] sm:$0xff]
    %v84 = vld [vmem:[%s1 + $0x1e8] sm:$0xff]
    %v85 = vld [vmem:[%s1 + $0x1f0] sm:$0xff]
    %v86 = vld [vmem:[%s1 + $0x1f8] sm:$0xff]
    %v87 = vld [vmem:[%s1 + $0x200] sm:$0xff]
    %v88 = vld [vmem:[%s1 + $0x208] sm:$0xff]
    %v89 = vld [vmem:[%s1 + $0x210] sm:$0xff]
    %v90 = vld [vmem:[%s1 + $0x218] sm:$0xff]
    %v91 = vld [vmem:[%s1 + $0x220] sm:$0xff]
    %v92 = vld [vmem:[%s1 + $0x228] sm:$0xff]
    %v93 = vld [vmem:[%s1 + $0x230] sm:$0xff]
    %v94 = vld [vmem:[%s1 + $0x238] sm:$0xff]
    %v95 = vld [vmem:[%s1 + $0x240] sm:$0xff]
    %v96 = vld [vmem:[%s1 + $0x248] sm:$0xff]
    %v97 = vld [vmem:[%s1 + $0x250] sm:$0xff]
    %v98 = vld [vmem:[%s1 + $0x258] sm:$0xff]
    %v99 = vld [vmem:[%s1 + $0x260] sm:$0xff]
    %v100 = vld [vmem:[%s1 + $0x268] sm:$0xff]
    %v101 = vld [vmem:[%s1 + $0x270] sm:$0xff]
    %v102 = vld [vmem:[%s1 + $0x278] sm:$0xff]
    %v103 = vld [vmem:[%s1 + $0x280] sm:$0xff]
    %v104 = vld [vmem:[%s1 + $0x288] sm:$0xff]
    %v105 = vld [vmem:[%s1 + $0x290] sm:$0xff]
    %v106 = vld [vmem:[%s1 + $0x298] sm:$0xff]
    %v107 = vld [vmem:[%s1 + $0x2a0] sm:$0xff]
    %v108 = vld [vmem:[%s1 + $0x2a8] sm:$0xff]
    %v109 = vld [vmem:[%s1 + $0x2b0] sm:$0xff]
    %v110 = vld [vmem:[%s1 + $0x2b8] sm:$0xff]
    %v111 = vld [vmem:[%s1 + $0x2c0] sm:$0xff]
    %v112 = vld [vmem:[%s1 + $0x2c8] sm:$0xff]
    %v113 = vld [vmem:[%s1 + $0x2d0] sm:$0xff]
    %v114 = vld [vmem:[%s1 + $0x2d8] sm:$0xff]
    %v115 = vld [vmem:[%s1 + $0x2e0] sm:$0xff]
    %v116 = vld [vmem:[%s1 + $0x2e8] sm:$0xff]
    %v117 = vld [vmem:[%s1 + $0x2f0] sm:$0xff]
    %v118 = vld [vmem:[%s1 + $0x2f8] sm:$0xff]
    %v119 = vld [vmem:[%s1 + $0x300] sm:$0xff]
    %v120 = vld [vmem:[%s1 + $0x308] sm:$0xff]
    %v121 = vld [vmem:[%s1 + $0x310] sm:$0xff]
    %v122 = vld [vmem:[%s1 + $0x318] sm:$0xff]
    %v123 = vld [vmem:[%s1 + $0x320] sm:$0xff]
    %v124 = vld [vmem:[%s1 + $0x328] sm:$0xff]
    %v125 = vld [vmem:[%s1 + $0x330] sm:$0xff]
    %v126 = vld [vmem:[%s1 + $0x338] sm:$0xff]
    %v127 = vld [vmem:[%s1 + $0x340] sm:$0xff]
    %v128 = vld [vmem:[%s1 + $0x348] sm:$0xff]
    %v129 = vld [vmem:[%s1 + $0x350] sm:$0xff]
    %v130 = vld [vmem:[%s1 + $0x358] sm:$0xff]
    %v131 = vld [vmem:[%s1 + $0x360] sm:$0xff]
    %v132 = vld [vmem:[%s1 + $0x368] sm:$0xff]
    %v133 = vld [vmem:[%s1 + $0x370] sm:$0xff]
    %v134 = vld [vmem:[%s1 + $0x378] sm:$0xff]
    %v135 = vld [vmem:[%s1 + $0x380] sm:$0xff]
    %v136 = vld [vmem:[%s1 + $0x388] sm:$0xff]
    %v137 = vld [vmem:[%s1 + $0x390] sm:$0xff]
    %v138 = vld [vmem:[%s1 + $0x398] sm:$0xff]
    %v139 = vld [vmem:[%s1 + $0x3a0] sm:$0xff]
    %v140 = vld [vmem:[%s1 + $0x3a8] sm:$0xff]
    %v141 = vld [vmem:[%s1 + $0x3b0] sm:$0xff]
    %v142 = vld [vmem:[%s1 + $0x3b8] sm:$0xff]
    %v143 = vld [vmem:[%s1 + $0x3c0] sm:$0xff]
    %v144 = vld [vmem:[%s1 + $0x3c8] sm:$0xff]
    %v145 = vld [vmem:[%s1 + $0x3d0] sm:$0xff]
    %v146 = vld [vmem:[%s1 + $0x3d8] sm:$0xff]
    %v147 = vld [vmem:[%s1 + $0x3e0] sm:$0xff]
    %v148 = vld [vmem:[%s1 + $0x3e8] sm:$0xff]
    %v149 = vld [vmem:[%s1 + $0x3f0] sm:$0xff]
    %v150 = vld [vmem:[%s1 + $0x3f8] sm:$0xff]
    %v151 = vld [vmem:[%s2] sm:$0x1]
    %v153 = vlaneseq
    %v154 = vshrl.u32 %v153, 7
    %v155 = vsub.s32 0, %v154
    %v156 = vrot.slane %v151, %v155
    %158 = vmatprep.subr.mxu0 0.0
    %159 = vmatpush1.msra.mxu0 %v23
    %160 = vmatprep.subr.mxu0 0.0
    %161 = vmatpush1.msra.mxu0 %v24
    %162 = vmatprep.subr.mxu0 0.0
    %163 = vmatpush1.msra.mxu0 %v25
    %164 = vmatprep.subr.mxu0 0.0
    %165 = vmatpush1.msra.mxu0 %v26
    %166 = vmatprep.subr.mxu0 0.0
    %167 = vmatpush1.msra.mxu0 %v27
    %168 = vmatprep.subr.mxu0 0.0
    %169 = vmatpush1.msra.mxu0 %v28
    %170 = vmatprep.subr.mxu0 0.0
    %171 = vmatpush1.msra.mxu0 %v29
    %172 = vmatprep.subr.mxu0 0.0
    %173 = vmatpush1.msra.mxu0 %v30
    %174 = vmatprep.subr.mxu0 0.0
    %175 = vmatpush1.msra.mxu0 %v31
    %176 = vmatprep.subr.mxu0 0.0
    %177 = vmatpush1.msra.mxu0 %v32
    %178 = vmatprep.subr.mxu0 0.0
    %179 = vmatpush1.msra.mxu0 %v33
    %180 = vmatprep.subr.mxu0 0.0
    %181 = vmatpush1.msra.mxu0 %v34
    %182 = vmatprep.subr.mxu0 0.0
    %183 = vmatpush1.msra.mxu0 %v35
    %184 = vmatprep.subr.mxu0 0.0
    %185 = vmatpush1.msra.mxu0 %v36
    %186 = vmatprep.subr.mxu0 0.0
    %187 = vmatpush1.msra.mxu0 %v37
    %188 = vmatprep.subr.mxu0 0.0
    %189 = vmatpush1.msra.mxu0 %v38
    %190 = vmatprep.subr.mxu0 0.0
    %191 = vmatpush1.msra.mxu0 %v39
    %192 = vmatprep.subr.mxu0 0.0
    %193 = vmatpush1.msra.mxu0 %v40
    %194 = vmatprep.subr.mxu0 0.0
    %195 = vmatpush1.msra.mxu0 %v41
    %196 = vmatprep.subr.mxu0 0.0
    %197 = vmatpush1.msra.mxu0 %v42
    %198 = vmatprep.subr.mxu0 0.0
    %199 = vmatpush1.msra.mxu0 %v43
    %200 = vmatprep.subr.mxu0 0.0
    %201 = vmatpush1.msra.mxu0 %v44
    %202 = vmatprep.subr.mxu0 0.0
    %203 = vmatpush1.msra.mxu0 %v45
    %204 = vmatprep.subr.mxu0 0.0
    %205 = vmatpush1.msra.mxu0 %v46
    %206 = vmatprep.subr.mxu0 0.0
    %207 = vmatpush1.msra.mxu0 %v47
    %208 = vmatprep.subr.mxu0 0.0
    %209 = vmatpush1.msra.mxu0 %v48
    %210 = vmatprep.subr.mxu0 0.0
    %211 = vmatpush1.msra.mxu0 %v49
    %212 = vmatprep.subr.mxu0 0.0
    %213 = vmatpush1.msra.mxu0 %v50
    %214 = vmatprep.subr.mxu0 0.0
    %215 = vmatpush1.msra.mxu0 %v51
    %216 = vmatprep.subr.mxu0 0.0
    %217 = vmatpush1.msra.mxu0 %v52
    %218 = vmatprep.subr.mxu0 0.0
    %219 = vmatpush1.msra.mxu0 %v53
    %220 = vmatprep.subr.mxu0 0.0
    %221 = vmatpush1.msra.mxu0 %v54
    %222 = vmatprep.mubr.f32.mxu0 %v16
    %223 = vmatmul.mubr.f32.gmra.mrb[0].mxu0 %v15
    %v224 = vpop.f32.mrb[0].mxu0
    %v225 = vadd.f32 %v156, %v224
    %v226 = vpop.f32.mrb[0].mxu0
    %227 = vdwg.mxu0
    %228 = vmatprep.subr.mxu0 0.0
    %229 = vmatpush1.msra.mxu0 %v55
    %230 = vmatprep.subr.mxu0 0.0
    %231 = vmatpush1.msra.mxu0 %v56
    %232 = vmatprep.subr.mxu0 0.0
    %233 = vmatpush1.msra.mxu0 %v57
    %234 = vmatprep.subr.mxu0 0.0
    %235 = vmatpush1.msra.mxu0 %v58
    %236 = vmatprep.subr.mxu0 0.0
    %237 = vmatpush1.msra.mxu0 %v59
    %238 = vmatprep.subr.mxu0 0.0
    %239 = vmatpush1.msra.mxu0 %v60
    %240 = vmatprep.subr.mxu0 0.0
    %241 = vmatpush1.msra.mxu0 %v61
    %242 = vmatprep.subr.mxu0 0.0
    %243 = vmatpush1.msra.mxu0 %v62
    %244 = vmatprep.subr.mxu0 0.0
    %245 = vmatpush1.msra.mxu0 %v63
    %246 = vmatprep.subr.mxu0 0.0
    %247 = vmatpush1.msra.mxu0 %v64
    %248 = vmatprep.subr.mxu0 0.0
    %249 = vmatpush1.msra.mxu0 %v65
    %250 = vmatprep.subr.mxu0 0.0
    %251 = vmatpush1.msra.mxu0 %v66
    %252 = vmatprep.subr.mxu0 0.0
    %253 = vmatpush1.msra.mxu0 %v67
    %254 = vmatprep.subr.mxu0 0.0
    %255 = vmatpush1.msra.mxu0 %v68
    %256 = vmatprep.subr.mxu0 0.0
    %257 = vmatpush1.msra.mxu0 %v69
    %258 = vmatprep.subr.mxu0 0.0
    %259 = vmatpush1.msra.mxu0 %v70
    %260 = vmatprep.subr.mxu0 0.0
    %261 = vmatpush1.msra.mxu0 %v71
    %262 = vmatprep.subr.mxu0 0.0
    %263 = vmatpush1.msra.mxu0 %v72
    %264 = vmatprep.subr.mxu0 0.0
    %265 = vmatpush1.msra.mxu0 %v73
    %266 = vmatprep.subr.mxu0 0.0
    %267 = vmatpush1.msra.mxu0 %v74
    %268 = vmatprep.subr.mxu0 0.0
    %269 = vmatpush1.msra.mxu0 %v75
    %270 = vmatprep.subr.mxu0 0.0
    %271 = vmatpush1.msra.mxu0 %v76
    %272 = vmatprep.subr.mxu0 0.0
    %273 = vmatpush1.msra.mxu0 %v77
    %274 = vmatprep.subr.mxu0 0.0
    %275 = vmatpush1.msra.mxu0 %v78
    %276 = vmatprep.subr.mxu0 0.0
    %277 = vmatpush1.msra.mxu0 %v79
    %278 = vmatprep.subr.mxu0 0.0
    %279 = vmatpush1.msra.mxu0 %v80
    %280 = vmatprep.subr.mxu0 0.0
    %281 = vmatpush1.msra.mxu0 %v81
    %282 = vmatprep.subr.mxu0 0.0
    %283 = vmatpush1.msra.mxu0 %v82
    %284 = vmatprep.subr.mxu0 0.0
    %285 = vmatpush1.msra.mxu0 %v83
    %286 = vmatprep.subr.mxu0 0.0
    %287 = vmatpush1.msra.mxu0 %v84
    %288 = vmatprep.subr.mxu0 0.0
    %289 = vmatpush1.msra.mxu0 %v85
    %290 = vmatprep.subr.mxu0 0.0
    %291 = vmatpush1.msra.mxu0 %v86
    %292 = vmatprep.mubr.f32.mxu0 %v18
    %293 = vmatmul.mubr.f32.gmra.mrb[0].mxu0 %v17
    %v294 = vpop.f32.mrb[0].mxu0
    %v295 = vadd.f32 %v225, %v294
    %v296 = vpop.f32.mrb[0].mxu0
    %297 = vdwg.mxu0
    %298 = vmatprep.subr.mxu0 0.0
    %299 = vmatpush1.msra.mxu0 %v87
    %300 = vmatprep.subr.mxu0 0.0
    %301 = vmatpush1.msra.mxu0 %v88
    %302 = vmatprep.subr.mxu0 0.0
    %303 = vmatpush1.msra.mxu0 %v89
    %304 = vmatprep.subr.mxu0 0.0
    %305 = vmatpush1.msra.mxu0 %v90
    %306 = vmatprep.subr.mxu0 0.0
    %307 = vmatpush1.msra.mxu0 %v91
    %308 = vmatprep.subr.mxu0 0.0
    %309 = vmatpush1.msra.mxu0 %v92
    %310 = vmatprep.subr.mxu0 0.0
    %311 = vmatpush1.msra.mxu0 %v93
    %312 = vmatprep.subr.mxu0 0.0
    %313 = vmatpush1.msra.mxu0 %v94
    %314 = vmatprep.subr.mxu0 0.0
    %315 = vmatpush1.msra.mxu0 %v95
    %316 = vmatprep.subr.mxu0 0.0
    %317 = vmatpush1.msra.mxu0 %v96
    %318 = vmatprep.subr.mxu0 0.0
    %319 = vmatpush1.msra.mxu0 %v97
    %320 = vmatprep.subr.mxu0 0.0
    %321 = vmatpush1.msra.mxu0 %v98
    %322 = vmatprep.subr.mxu0 0.0
    %323 = vmatpush1.msra.mxu0 %v99
    %324 = vmatprep.subr.mxu0 0.0
    %325 = vmatpush1.msra.mxu0 %v100
    %326 = vmatprep.subr.mxu0 0.0
    %327 = vmatpush1.msra.mxu0 %v101
    %328 = vmatprep.subr.mxu0 0.0
    %329 = vmatpush1.msra.mxu0 %v102
    %330 = vmatprep.subr.mxu0 0.0
    %331 = vmatpush1.msra.mxu0 %v103
    %332 = vmatprep.subr.mxu0 0.0
    %333 = vmatpush1.msra.mxu0 %v104
    %334 = vmatprep.subr.mxu0 0.0
    %335 = vmatpush1.msra.mxu0 %v105
    %336 = vmatprep.subr.mxu0 0.0
    %337 = vmatpush1.msra.mxu0 %v106
    %338 = vmatprep.subr.mxu0 0.0
    %339 = vmatpush1.msra.mxu0 %v107
    %340 = vmatprep.subr.mxu0 0.0
    %341 = vmatpush1.msra.mxu0 %v108
    %342 = vmatprep.subr.mxu0 0.0
    %343 = vmatpush1.msra.mxu0 %v109
    %344 = vmatprep.subr.mxu0 0.0
    %345 = vmatpush1.msra.mxu0 %v110
    %346 = vmatprep.subr.mxu0 0.0
    %347 = vmatpush1.msra.mxu0 %v111
    %348 = vmatprep.subr.mxu0 0.0
    %349 = vmatpush1.msra.mxu0 %v112
    %350 = vmatprep.subr.mxu0 0.0
    %351 = vmatpush1.msra.mxu0 %v113
    %352 = vmatprep.subr.mxu0 0.0
    %353 = vmatpush1.msra.mxu0 %v114
    %354 = vmatprep.subr.mxu0 0.0
    %355 = vmatpush1.msra.mxu0 %v115
    %356 = vmatprep.subr.mxu0 0.0
    %357 = vmatpush1.msra.mxu0 %v116
    %358 = vmatprep.subr.mxu0 0.0
    %359 = vmatpush1.msra.mxu0 %v117
    %360 = vmatprep.subr.mxu0 0.0
    %361 = vmatpush1.msra.mxu0 %v118
    %362 = vmatprep.mubr.f32.mxu0 %v20
    %363 = vmatmul.mubr.f32.gmra.mrb[0].mxu0 %v19
    %v364 = vpop.f32.mrb[0].mxu0
    %v365 = vadd.f32 %v295, %v364
    %v366 = vpop.f32.mrb[0].mxu0
    %367 = vdwg.mxu0
    %368 = vmatprep.subr.mxu0 0.0
    %369 = vmatpush1.msra.mxu0 %v119
    %370 = vmatprep.subr.mxu0 0.0
    %371 = vmatpush1.msra.mxu0 %v120
    %372 = vmatprep.subr.mxu0 0.0
    %373 = vmatpush1.msra.mxu0 %v121
    %374 = vmatprep.subr.mxu0 0.0
    %375 = vmatpush1.msra.mxu0 %v122
    %376 = vmatprep.subr.mxu0 0.0
    %377 = vmatpush1.msra.mxu0 %v123
    %378 = vmatprep.subr.mxu0 0.0
    %379 = vmatpush1.msra.mxu0 %v124
    %380 = vmatprep.subr.mxu0 0.0
    %381 = vmatpush1.msra.mxu0 %v125
    %382 = vmatprep.subr.mxu0 0.0
    %383 = vmatpush1.msra.mxu0 %v126
    %384 = vmatprep.subr.mxu0 0.0
    %385 = vmatpush1.msra.mxu0 %v127
    %386 = vmatprep.subr.mxu0 0.0
    %387 = vmatpush1.msra.mxu0 %v128
    %388 = vmatprep.subr.mxu0 0.0
    %389 = vmatpush1.msra.mxu0 %v129
    %390 = vmatprep.subr.mxu0 0.0
    %391 = vmatpush1.msra.mxu0 %v130
    %392 = vmatprep.subr.mxu0 0.0
    %393 = vmatpush1.msra.mxu0 %v131
    %394 = vmatprep.subr.mxu0 0.0
    %395 = vmatpush1.msra.mxu0 %v132
    %396 = vmatprep.subr.mxu0 0.0
    %397 = vmatpush1.msra.mxu0 %v133
    %398 = vmatprep.subr.mxu0 0.0
    %399 = vmatpush1.msra.mxu0 %v134
    %400 = vmatprep.subr.mxu0 0.0
    %401 = vmatpush1.msra.mxu0 %v135
    %402 = vmatprep.subr.mxu0 0.0
    %403 = vmatpush1.msra.mxu0 %v136
    %404 = vmatprep.subr.mxu0 0.0
    %405 = vmatpush1.msra.mxu0 %v137
    %406 = vmatprep.subr.mxu0 0.0
    %407 = vmatpush1.msra.mxu0 %v138
    %408 = vmatprep.subr.mxu0 0.0
    %409 = vmatpush1.msra.mxu0 %v139
    %410 = vmatprep.subr.mxu0 0.0
    %411 = vmatpush1.msra.mxu0 %v140
    %412 = vmatprep.subr.mxu0 0.0
    %413 = vmatpush1.msra.mxu0 %v141
    %414 = vmatprep.subr.mxu0 0.0
    %415 = vmatpush1.msra.mxu0 %v142
    %416 = vmatprep.subr.mxu0 0.0
    %417 = vmatpush1.msra.mxu0 %v143
    %418 = vmatprep.subr.mxu0 0.0
    %419 = vmatpush1.msra.mxu0 %v144
    %420 = vmatprep.subr.mxu0 0.0
    %421 = vmatpush1.msra.mxu0 %v145
    %422 = vmatprep.subr.mxu0 0.0
    %423 = vmatpush1.msra.mxu0 %v146
    %424 = vmatprep.subr.mxu0 0.0
    %425 = vmatpush1.msra.mxu0 %v147
    %426 = vmatprep.subr.mxu0 0.0
    %427 = vmatpush1.msra.mxu0 %v148
    %428 = vmatprep.subr.mxu0 0.0
    %429 = vmatpush1.msra.mxu0 %v149
    %430 = vmatprep.subr.mxu0 0.0
    %431 = vmatpush1.msra.mxu0 %v150
    %432 = vmatprep.mubr.f32.mxu0 %v22
    %433 = vmatmul.mubr.f32.gmra.mrb[0].mxu0 %v21
    %v434 = vpop.f32.mrb[0].mxu0
    %v435 = vadd.f32 %v365, %v434
    %v436 = vpop.f32.mrb[0].mxu0
    %437 = vdwg.mxu0
    %vm438 = vcmp.ge.f32.partialorder %v435, 0.0
    %v439 = vmul.f32 %v435, 0.01
    %v440 = vsel %vm438, %v435, %v439
    %vm441 = vcmask 64512
    %442 = vst.msk [vmem:[#allocation2] sm:$0xff] %vm441, %v440
    // Predicated region
    $region14: #{tpu_custom_call.1} parent=1 // pred_check
      _
    $region15: #{tpu_custom_call.1} parent=1 // pred_check_branch
      %444 = sbr.rel (0) target = $region17
    $region16: #{tpu_custom_call.1} parent=1 // pred_region
      %s446 = ssub.s32 128, 128
      %447 = vsyncadd [#allocation3], %s446
      %s449 = sshll.u32 [#allocation2], 4
      %s450 = int_to_ptr.vmem [resolvable:$true] %s449
      %452 = dma.vmem_to_hbm [thread:$0]  %s450, 128, %s3, [#allocation3]
    $region17: #{tpu_custom_call.1} parent=1 // pred_fallthru
      _
    // Predicated region
    $region18: #{tpu_custom_call.1} parent=1 // pred_check
      _
    $region19: #{tpu_custom_call.1} parent=1 // pred_check_branch
      %454 = sbr.rel (0) target = $region21
    $region20: #{tpu_custom_call.1} parent=1 // pred_region
      %455 = dma.done [#allocation3], 128
    $region21: #{tpu_custom_call.1} parent=1 // pred_fallthru
      _
    %456 = vsyncpa [#allocation3], 1

</llo_original>
